<compile_context>
chip_gen: v7x
topology: tpu7x:2x2x1
jax: 0.10.0
libtpu: 0.0.40
codegen_flags: <defaults>
</compile_context>

<pallas_src>
import functools
import numpy as np
import jax
import jax.numpy as jnp
from jax.experimental import pallas as pl
from jax.experimental.pallas import tpu as pltpu

try:
    from scipy.optimize import linear_sum_assignment as _lsa
    _HAVE_SCIPY = True
except Exception:  # pragma: no cover
    _HAVE_SCIPY = False


# ----------------------------------------------------------------------------
# Pallas kernel: per-pair L_inf cross-distance matrices
# ----------------------------------------------------------------------------
def linf_cross_kernel(d1c_ref, d2r_ref, cross_ref, *, unroll):
    # d1c_ref : (Pb, N, 2)  diagram-1 in "column" layout:
    #           d1c[p, i, 0] = birth_i, d1c[p, i, 1] = death_i
    # d2r_ref : (Pb, 2, N)  diagram-2 lane-dense rows:
    #           d2r[p, 0, j] = birth_j, d2r[p, 1, j] = death_j
    # cross_ref: (Pb, N, N) with cross[p, i, j] = ||x_i - y_j||_inf
    Pb = cross_ref.shape[0]

    def body(p, carry):
        b1c = d1c_ref[p, :, 0:1]          # (N, 1) births of D1 (sublanes)
        e1c = d1c_ref[p, :, 1:2]          # (N, 1) deaths of D1
        b2r = d2r_ref[p, 0:1, :]          # (1, N) births of D2 (lanes)
        e2r = d2r_ref[p, 1:2, :]          # (1, N) deaths of D2
        # Single fused VPU expression streamed straight into cross_ref:
        # no broadcast temporaries, no transposes (v5e has only 1 vst slot).
        cross_ref[p] = jnp.maximum(jnp.abs(b1c - b2r), jnp.abs(e1c - e2r))
        return carry

    jax.lax.fori_loop(0, Pb, body, 0, unroll=unroll)


def _vmem_capacity_bytes():
    try:
        return int(pltpu.get_tpu_info().vmem_capacity_bytes)
    except Exception:  # pragma: no cover
        return 64 * 1024 * 1024  # conservative (v7x-sized) fallback


def _choose_pair_block(P, N, vmem_cap):
    """Pairs per grid step: amortize the ~0.35us per-step overhead with big
    output DMAs (>= ~1-2 MiB at N=128), stay inside a generation-aware VMEM
    budget, and prefer >= 4 grid steps (2 steps per TensorCore on v7x)."""
    if P <= 1:
        return 1
    # double-buffered per-step budget: 128 MiB parts (v5e/v6e) get more room
    budget = 40 * 1024 * 1024 if vmem_cap >= 100 * 1024 * 1024 else 24 * 1024 * 1024
    per_pair = 2 * 4 * (N * N        # cross output block (double-buffered)
                        + N * 128    # column-layout D1 block (lane-padded in VMEM)
                        + 8 * N)     # row-layout D2 block (sublane-padded)
    vmem_bound = max(1, budget // per_pair)
    pb = int(min(32, vmem_bound, P))
    # prefer >= 4 grid steps so each v7x TensorCore gets >= 2 pipelined steps
    while pb > 1 and pl.cdiv(P, pb) < 4:
        pb -= 1
    return max(1, pb)


def linf_cross_pallas(d1c, d2r, pair_block):
    """d1c: (P_pad, N, 2), d2r: (P_pad, 2, N) float32, P_pad % pair_block == 0."""
    P, N, two = d1c.shape
    assert two == 2 and d2r.shape == (P, 2, N)
    assert P % pair_block == 0 and N % 128 == 0

    vmem_cap = _vmem_capacity_bytes()
    # per-step VMEM: double-buffered in/out blocks + in-kernel (N,N) temporaries
    est = (2 * 4 * pair_block * (N * N + N * 128 + 8 * N)) + 4 * N * N * 4
    vmem_limit = int(min(0.70 * vmem_cap, max(2 * est, 32 * 1024 * 1024)))

    kernel = functools.partial(linf_cross_kernel, unroll=bool(N <= 128))

    cost = pl.CostEstimate(
        flops=5 * P * N * N,                      # 2 sub + 2 abs + 1 max per elem
        transcendentals=0,
        bytes_accessed=4 * (P * N * N + 6 * P * N),
    )

    return pl.pallas_call(
        kernel,
        out_shape=jax.ShapeDtypeStruct((P, N, N), jnp.float32),
        grid=(P // pair_block,),
        in_specs=[
            pl.BlockSpec((pair_block, N, 2), lambda p: (p, 0, 0)),
            pl.BlockSpec((pair_block, 2, N), lambda p: (p, 0, 0)),
        ],
        out_specs=pl.BlockSpec((pair_block, N, N), lambda p: (p, 0, 0)),
        compiler_params=pltpu.CompilerParams(
            dimension_semantics=("parallel",),
            vmem_limit_bytes=vmem_limit,
        ),
        cost_estimate=cost,
    )(d1c, d2r)


# ----------------------------------------------------------------------------
# Host-side combinatorics: cubical H0 persistence (union-find, 8-connectivity)
# ----------------------------------------------------------------------------
def cubical_persistence_dim0(img):
    img = np.asarray(img, dtype=np.float64)
    H, W = img.shape
    vals = img.ravel()
    order = np.argsort(vals, kind="stable")
    parent = np.arange(H * W, dtype=np.int64)
    birth = np.zeros(H * W, dtype=np.float64)
    added = np.zeros(H * W, dtype=bool)

    def find(x):
        root = x
        while parent[root] != root:
            root = parent[root]
        while parent[x] != root:
            parent[x], x = root, parent[x]
        return root

    pairs = []
    for idx in order:
        idx = int(idx)
        y, x = divmod(idx, W)
        added[idx] = True
        birth[idx] = vals[idx]
        v = vals[idx]
        for dy in (-1, 0, 1):
            for dx in (-1, 0, 1):
                if dy == 0 and dx == 0:
                    continue
                ny, nx = y + dy, x + dx
                if 0 <= ny < H and 0 <= nx < W:
                    nidx = ny * W + nx
                    if added[nidx]:
                        ra, rb = find(idx), find(nidx)
                        if ra != rb:
                            # elder rule: younger component dies at value v
                            if birth[ra] < birth[rb] or (birth[ra] == birth[rb] and ra < rb):
                                older, younger = ra, rb
                            else:
                                older, younger = rb, ra
                            if v > birth[younger]:  # drop zero-persistence pairs
                                pairs.append((birth[younger], v))
                            parent[younger] = older
    # essential class (global min, +inf) intentionally dropped (see TODO above)
    return np.array(pairs, dtype=np.float32).reshape(-1, 2)


# ----------------------------------------------------------------------------
# Host-side optimal matching
# ----------------------------------------------------------------------------
def _hungarian(cost):
    n = len(cost)
    if n == 0:
        return 0.0
    INF = float("inf")
    u = [0.0] * (n + 1)
    v = [0.0] * (n + 1)
    p = [0] * (n + 1)
    way = [0] * (n + 1)
    for i in range(1, n + 1):
        p[0] = i
        j0 = 0
        minv = [INF] * (n + 1)
        used = [False] * (n + 1)
        while True:
            used[j0] = True
            i0 = p[j0]
            delta = INF
            j1 = 0
            for j in range(1, n + 1):
                if not used[j]:
                    cur = cost[i0 - 1][j - 1] - u[i0] - v[j]
                    if cur < minv[j]:
                        minv[j] = cur
                        way[j] = j0
                    if minv[j] < delta:
                        delta = minv[j]
                        j1 = j
            for j in range(n + 1):
                if used[j]:
                    u[p[j]] += delta
                    v[j] -= delta
                else:
                    minv[j] -= delta
            j0 = j1
            if p[j0] == 0:
                break
        while True:
            j1 = way[j0]
            p[j0] = p[j1]
            j0 = j1
            if j0 == 0:
                break
    total = 0.0
    for j in range(1, n + 1):
        if p[j]:
            total += cost[p[j] - 1][j - 1]
    return total


def _w1_from_costs(cross, g1, g2):
    """Exact W_1 (q=1) between two diagrams given cross costs + diagonal gaps."""
    n, m = cross.shape
    if n == 0 and m == 0:
        return 0.0
    if n == 0:
        return float(np.sum(g2))
    if m == 0:
        return float(np.sum(g1))
    size = n + m
    C = np.zeros((size, size), dtype=np.float64)
    C[:n, :m] = cross
    C[:n, m:] = g1[:, None]          # point of D1 -> diagonal
    C[n:, :m] = g2[None, :]          # point of D2 -> diagonal
    # bottom-right block (diagonal <-> diagonal) stays 0
    if _HAVE_SCIPY:
        r, c = _lsa(C)
        return float(C[r, c].sum())
    return float(_hungarian(C.tolist()))


# ----------------------------------------------------------------------------
# topo_loss forward
# ----------------------------------------------------------------------------
def topo_loss_forward(pred, gt):
    # pred, gt: (B, C, H, W) -- drop background channel like the PyTorch module
    object_pred = np.asarray(pred)[:, 1:].astype(np.float32)
    object_gt = np.asarray(gt)[:, 1:].astype(np.float32)
    B, C, H, W = object_pred.shape

    diags_pred, diags_gt = [], []
    for b in range(B):
        for c in range(C):
            diags_pred.append(cubical_persistence_dim0(object_pred[b, c]))
            diags_gt.append(cubical_persistence_dim0(object_gt[b, c]))

    P = len(diags_pred)
    if P == 0:
        return 0.0

    # Host-side diagonal gaps |death - birth| / 2 (only 2*P*N elements).
    gaps_pred = [0.5 * np.abs(d[:, 1] - d[:, 0]) for d in diags_pred]
    gaps_gt = [0.5 * np.abs(d[:, 1] - d[:, 0]) for d in diags_gt]

    # Bucket pairs by point count (N in {128, 256, 512, ...}) so one large
    # diagram does not quadratically inflate every pair's N^2 cost matrix.
    buckets = {}
    for p in range(P):
        n, m = diags_pred[p].shape[0], diags_gt[p].shape[0]
        if n == 0 or m == 0:
            continue   # handled directly from the diagonal gaps, no kernel work
        Nb = 128 * pl.next_power_of_2(pl.cdiv(max(n, m), 128))
        buckets.setdefault(int(Nb), []).append(p)

    vmem_cap = _vmem_capacity_bytes()
    cross_by_pair = {}
    for Nb, pair_ids in sorted(buckets.items()):
        Pn = len(pair_ids)
        Pb = _choose_pair_block(Pn, Nb, vmem_cap)
        P_pad = pl.cdiv(Pn, Pb) * Pb

        d1c = np.zeros((P_pad, Nb, 2), dtype=np.float32)   # D1 column layout
        d2r = np.zeros((P_pad, 2, Nb), dtype=np.float32)   # D2 lane-dense rows
        for k, p in enumerate(pair_ids):
            d1, d2 = diags_pred[p], diags_gt[p]
            d1c[k, :d1.shape[0], :] = d1
            d2r[k, :, :d2.shape[0]] = d2.T

        cross = jax.block_until_ready(
            linf_cross_pallas(jnp.asarray(d1c), jnp.asarray(d2r), Pb))
        # NOTE: for very large P/N, copy only the [:n, :m] slices instead of the
        # full padded tensor; at these sizes one bulk device->host copy is fine.
        cross = np.asarray(cross)
        for k, p in enumerate(pair_ids):
            cross_by_pair[p] = cross[k]

    total = 0.0
    for p in range(P):
        n, m = diags_pred[p].shape[0], diags_gt[p].shape[0]
        if p in cross_by_pair:
            c = cross_by_pair[p][:n, :m]
        else:
            c = np.zeros((n, m), dtype=np.float32)
        total += _w1_from_costs(c, gaps_pred[p], gaps_gt[p])
    return total


if __name__ == "__main__":
    # --- direct Pallas-kernel check against a numpy reference -----------------
    rng = np.random.RandomState(0)
    Pchk, Nchk = 4, 128
    d1c_chk = rng.rand(Pchk, Nchk, 2).astype(np.float32)
    d2r_chk = rng.rand(Pchk, 2, Nchk).astype(np.float32)
    cross_chk = np.asarray(jax.block_until_ready(
        linf_cross_pallas(jnp.asarray(d1c_chk), jnp.asarray(d2r_chk), 2)))
    ref_chk = np.maximum(
        np.abs(d1c_chk[:, :, 0][:, :, None] - d2r_chk[:, 0, :][:, None, :]),
        np.abs(d1c_chk[:, :, 1][:, :, None] - d2r_chk[:, 1, :][:, None, :]))
    assert np.allclose(cross_chk, ref_chk, atol=1e-6)

    # --- end-to-end forward ----------------------------------------------------
    key = jax.random.PRNGKey(0)
    k1, k2 = jax.random.split(key)
    pred = jax.random.normal(k1, (2, 4, 16, 16), dtype=jnp.float32)
    gt = jax.random.normal(k2, (2, 4, 16, 16), dtype=jnp.float32)

    loss = topo_loss_forward(pred, gt)
    assert np.isfinite(loss)
    print("KERNEL_OK")
</pallas_src>

<mosaic_0001>
module attributes {stable_mosaic.version = 11 : i64} {
  func.func @linf_cross_kernel(%arg0: i32, %arg1: memref<2x128x2xf32, #tpu.memory_space<vmem>>, %arg2: memref<2x2x128xf32, #tpu.memory_space<vmem>>, %arg3: memref<2x128x128xf32, #tpu.memory_space<vmem>>) attributes {dimension_semantics = [#tpu.dimension_semantics<parallel>], iteration_bounds = array<i64: 2>, scalar_prefetch = 0 : i64, scratch_operands = 0 : i64, tpu.core_type = #tpu.core_type<tc>, window_params = [{transform_indices = @transform_0, window_bounds = array<i64: 2, 128, 2>}, {transform_indices = @transform_1, window_bounds = array<i64: 2, 2, 128>}, {transform_indices = @transform_2, window_bounds = array<i64: 2, 128, 128>}]} {
    %c0_i32 = arith.constant 0 : i32
    %0 = arith.index_cast %c0_i32 : i32 to index
    %c0 = arith.constant 0 : index
    %c0_0 = arith.constant 0 : index
    %1 = vector.load %arg1[%0, %c0, %c0_0] : memref<2x128x2xf32, #tpu.memory_space<vmem>>, vector<1x128x1xf32>
    %2 = vector.shape_cast %1 : vector<1x128x1xf32> to vector<128x1xf32>
    %3 = arith.index_cast %c0_i32 : i32 to index
    %c0_1 = arith.constant 0 : index
    %c1 = arith.constant 1 : index
    %4 = vector.load %arg1[%3, %c0_1, %c1] : memref<2x128x2xf32, #tpu.memory_space<vmem>>, vector<1x128x1xf32>
    %5 = vector.shape_cast %4 : vector<1x128x1xf32> to vector<128x1xf32>
    %6 = arith.index_cast %c0_i32 : i32 to index
    %c0_2 = arith.constant 0 : index
    %c0_3 = arith.constant 0 : index
    %7 = vector.load %arg2[%6, %c0_2, %c0_3] : memref<2x2x128xf32, #tpu.memory_space<vmem>>, vector<1x1x128xf32>
    %8 = vector.shape_cast %7 : vector<1x1x128xf32> to vector<1x128xf32>
    %9 = arith.index_cast %c0_i32 : i32 to index
    %c1_4 = arith.constant 1 : index
    %c0_5 = arith.constant 0 : index
    %10 = vector.load %arg2[%9, %c1_4, %c0_5] : memref<2x2x128xf32, #tpu.memory_space<vmem>>, vector<1x1x128xf32>
    %11 = vector.shape_cast %10 : vector<1x1x128xf32> to vector<1x128xf32>
    %12 = vector.broadcast %2 : vector<128x1xf32> to vector<128x128xf32>
    %13 = vector.broadcast %8 : vector<1x128xf32> to vector<128x128xf32>
    %14 = arith.subf %12, %13 : vector<128x128xf32>
    %15 = math.absf %14 : vector<128x128xf32>
    %16 = vector.broadcast %5 : vector<128x1xf32> to vector<128x128xf32>
    %17 = vector.broadcast %11 : vector<1x128xf32> to vector<128x128xf32>
    %18 = arith.subf %16, %17 : vector<128x128xf32>
    %19 = math.absf %18 : vector<128x128xf32>
    %20 = arith.maximumf %15, %19 : vector<128x128xf32>
    %21 = arith.index_cast %c0_i32 : i32 to index
    %c0_6 = arith.constant 0 : index
    %c0_7 = arith.constant 0 : index
    %22 = vector.load %arg3[%21, %c0_6, %c0_7] : memref<2x128x128xf32, #tpu.memory_space<vmem>>, vector<1x128x128xf32>
    %23 = vector.shape_cast %22 : vector<1x128x128xf32> to vector<128x128xf32>
    %24 = vector.shape_cast %20 : vector<128x128xf32> to vector<1x128x128xf32>
    tpu.vector_store %arg3[%21, %c0_6, %c0_7], %24 {strides = array<i32>} : memref<2x128x128xf32, #tpu.memory_space<vmem>>, vector<1x128x128xf32>,
    %c1_i32 = arith.constant 1 : i32
    %25 = arith.index_cast %c1_i32 : i32 to index
    %c0_8 = arith.constant 0 : index
    %c0_9 = arith.constant 0 : index
    %26 = vector.load %arg1[%25, %c0_8, %c0_9] : memref<2x128x2xf32, #tpu.memory_space<vmem>>, vector<1x128x1xf32>
    %27 = vector.shape_cast %26 : vector<1x128x1xf32> to vector<128x1xf32>
    %28 = arith.index_cast %c1_i32 : i32 to index
    %c0_10 = arith.constant 0 : index
    %c1_11 = arith.constant 1 : index
    %29 = vector.load %arg1[%28, %c0_10, %c1_11] : memref<2x128x2xf32, #tpu.memory_space<vmem>>, vector<1x128x1xf32>
    %30 = vector.shape_cast %29 : vector<1x128x1xf32> to vector<128x1xf32>
    %31 = arith.index_cast %c1_i32 : i32 to index
    %c0_12 = arith.constant 0 : index
    %c0_13 = arith.constant 0 : index
    %32 = vector.load %arg2[%31, %c0_12, %c0_13] : memref<2x2x128xf32, #tpu.memory_space<vmem>>, vector<1x1x128xf32>
    %33 = vector.shape_cast %32 : vector<1x1x128xf32> to vector<1x128xf32>
    %34 = arith.index_cast %c1_i32 : i32 to index
    %c1_14 = arith.constant 1 : index
    %c0_15 = arith.constant 0 : index
    %35 = vector.load %arg2[%34, %c1_14, %c0_15] : memref<2x2x128xf32, #tpu.memory_space<vmem>>, vector<1x1x128xf32>
    %36 = vector.shape_cast %35 : vector<1x1x128xf32> to vector<1x128xf32>
    %37 = vector.broadcast %27 : vector<128x1xf32> to vector<128x128xf32>
    %38 = vector.broadcast %33 : vector<1x128xf32> to vector<128x128xf32>
    %39 = arith.subf %37, %38 : vector<128x128xf32>
    %40 = math.absf %39 : vector<128x128xf32>
    %41 = vector.broadcast %30 : vector<128x1xf32> to vector<128x128xf32>
    %42 = vector.broadcast %36 : vector<1x128xf32> to vector<128x128xf32>
    %43 = arith.subf %41, %42 : vector<128x128xf32>
    %44 = math.absf %43 : vector<128x128xf32>
    %45 = arith.maximumf %40, %44 : vector<128x128xf32>
    %46 = arith.index_cast %c1_i32 : i32 to index
    %c0_16 = arith.constant 0 : index
    %c0_17 = arith.constant 0 : index
    %47 = vector.load %arg3[%46, %c0_16, %c0_17] : memref<2x128x128xf32, #tpu.memory_space<vmem>>, vector<1x128x128xf32>
    %48 = vector.shape_cast %47 : vector<1x128x128xf32> to vector<128x128xf32>
    %49 = vector.shape_cast %45 : vector<128x128xf32> to vector<1x128x128xf32>
    tpu.vector_store %arg3[%46, %c0_16, %c0_17], %49 {strides = array<i32>} : memref<2x128x128xf32, #tpu.memory_space<vmem>>, vector<1x128x128xf32>,
    %c2_i32 = arith.constant 2 : i32
    return
  }
  func.func @transform_0(%arg0: i32) -> (i32, i32, i32) {
    %c0_i32 = arith.constant 0 : i32
    %c0_i32_0 = arith.constant 0 : i32
    %c0_i32_1 = arith.constant 0 : i32
    return %arg0, %c0_i32, %c0_i32_0 : i32, i32, i32
  }
  func.func @transform_1(%arg0: i32) -> (i32, i32, i32) {
    %c0_i32 = arith.constant 0 : i32
    %c0_i32_0 = arith.constant 0 : i32
    %c0_i32_1 = arith.constant 0 : i32
    return %arg0, %c0_i32, %c0_i32_0 : i32, i32, i32
  }
  func.func @transform_2(%arg0: i32) -> (i32, i32, i32) {
    %c0_i32 = arith.constant 0 : i32
    %c0_i32_0 = arith.constant 0 : i32
    %c0_i32_1 = arith.constant 0 : i32
    return %arg0, %c0_i32, %c0_i32_0 : i32, i32, i32
  }
}

</mosaic_0001>

<llo_original>
// kernel: tpu_custom_call.1
$region0: #{tpu_custom_call.1}
  #allocation0 [shape = 'u32[]', space=smem, size = 0x4, offset = 0x4, fixed_abs, tag = 'smem constant byte address 0x4 - core index']
  #allocation1 [shape = 'u32[144,128]{1,0:T(1,128)}', space=vmem, size = 0x12000, scoped, tag = 'internal scratch']
  %s0 = inlined_call_operand.vmem [shape: f32[4,128,2], index: 0, kind: input, shape index: {}]
  %s1 = inlined_call_operand.vmem [shape: f32[4,2,128], index: 1, kind: input, shape index: {}]
  %s2 = inlined_call_operand.hbm [shape: f32[4,128,128], index: 2, kind: output, shape index: {}]
  %s3 = sld [smem:[#allocation0]]
  $region41: #{tpu_custom_call.1} parent=0
    _
  %s5 = ssub.s32 1, %s3
  %s6 = scalar_select 0, %s5, %s3
  $region1: #{tpu_custom_call.1} parent=0
    #allocation2 [shape = 'u8[262144]{0}', space=vmem, size = 0x40000, scoped, tag = 'output window, operand 0']
    #allocation3 [shape = 's32[2]{0}', space=sflag, size = 0x8, scoped, tag = 'scoped memory for tpu_custom_call.1']
    %7 = vsyncpa [#allocation3], 0
    %s8 = scalar_lea.sflag [#allocation3], 1
    %9 = vsyncpa %s8, 0
    loop: start=0, step=1, limit=4
    $region2: #{tpu_custom_call.1} parent=1 // loop_pre_header
      _
    $region3: #{tpu_custom_call.1} parent=1 // loop_header
      %s11 = sphi 0, %s15
      %p12 = scmp.ge.s32.totalorder %s11, 4
      %s21 = sphi 0, %s23
      %s24 = sphi 0, %s21
      %s25 = sphi 0, %s24
      %s41 = sphi 0, %s25
      %s47 = sphi 0, %s49
      %s50 = sphi 0, %s47
      %s51 = sphi 0, %s50
      %s67 = sphi 0, %s51
      %s73 = sphi 0, %s75
      %s76 = sphi 0, %s73
      %s77 = sphi 0, %s76
      %s93 = sphi 0, %s77
    $region4: #{tpu_custom_call.1} parent=1 // loop_header_branch
      %14 = sbr.rel (%p12) target = $region8
    $region5: #{tpu_custom_call.1} parent=1 // loop_body
      %s16 = ssub.s32 %s11, 1
      %s17 = ssub.s32 %s11, 2
      %s18 = sadd.s32 %s11, 1
      %s19 = ssub.s32 %s11, %s18
      %p20 = scmp.eq.s32.totalorder %s19, 0
      %s22 = sadd.s32 %s21, 1
      %s23 = scalar_select %p20, %s21, %s22
      %p26 = pneg %p20
      %p27 = scmp.eq.s32.totalorder %s11, 1
      %p28 = por %p26, %p27
      %p29 = scmp.ne.s32.totalorder %s21, %s24
      %p30 = scmp.eq.s32.totalorder %s11, 0
      %p31 = por %p29, %p30
      %p32 = scmp.ne.s32.totalorder %s21, %s24
      %p33 = scmp.eq.s32.totalorder %s16, 1
      %p34 = por %p32, %p33
      %p35 = scmp.ne.s32.totalorder %s24, %s25
      %p36 = scmp.eq.s32.totalorder %s16, 0
      %p37 = por %p35, %p36
      %p38 = scmp.ne.s32.totalorder %s24, %s25
      %p39 = scmp.eq.s32.totalorder %s17, 1
      %p40 = por %p38, %p39
      %p42 = scmp.ne.s32.totalorder %s25, %s41
      %p43 = scmp.eq.s32.totalorder %s17, 0
      %p44 = por %p42, %p43
      %s45 = ssub.s32 %s11, %s18
      %p46 = scmp.eq.s32.totalorder %s45, 0
      %s48 = sadd.s32 %s47, 1
      %s49 = scalar_select %p46, %s47, %s48
      %p52 = pneg %p46
      %p53 = scmp.eq.s32.totalorder %s11, 1
      %p54 = por %p52, %p53
      %p55 = scmp.ne.s32.totalorder %s47, %s50
      %p56 = scmp.eq.s32.totalorder %s11, 0
      %p57 = por %p55, %p56
      %p58 = scmp.ne.s32.totalorder %s47, %s50
      %p59 = scmp.eq.s32.totalorder %s16, 1
      %p60 = por %p58, %p59
      %p61 = scmp.ne.s32.totalorder %s50, %s51
      %p62 = scmp.eq.s32.totalorder %s16, 0
      %p63 = por %p61, %p62
      %p64 = scmp.ne.s32.totalorder %s50, %s51
      %p65 = scmp.eq.s32.totalorder %s17, 1
      %p66 = por %p64, %p65
      %p68 = scmp.ne.s32.totalorder %s51, %s67
      %p69 = scmp.eq.s32.totalorder %s17, 0
      %p70 = por %p68, %p69
      %s71 = ssub.s32 %s11, %s18
      %p72 = scmp.eq.s32.totalorder %s71, 0
      %s74 = sadd.s32 %s73, 1
      %s75 = scalar_select %p72, %s73, %s74
      %p78 = pneg %p72
      %p79 = scmp.eq.s32.totalorder %s11, 1
      %p80 = por %p78, %p79
      %p81 = scmp.ne.s32.totalorder %s73, %s76
      %p82 = scmp.eq.s32.totalorder %s11, 0
      %p83 = por %p81, %p82
      %p84 = scmp.ne.s32.totalorder %s73, %s76
      %p85 = scmp.eq.s32.totalorder %s16, 1
      %p86 = por %p84, %p85
      %p87 = scmp.ne.s32.totalorder %s76, %s77
      %p88 = scmp.eq.s32.totalorder %s16, 0
      %p89 = por %p87, %p88
      %p90 = scmp.ne.s32.totalorder %s76, %s77
      %p91 = scmp.eq.s32.totalorder %s17, 1
      %p92 = por %p90, %p91
      %p94 = scmp.ne.s32.totalorder %s77, %s93
      %p95 = scmp.eq.s32.totalorder %s17, 0
      %p96 = por %p94, %p95
      %p97 = scmp.le.s32.totalorder 1, %s11
      %p98 = scmp.lt.s32.totalorder %s11, 3
      %p99 = pnand %p97, %p98
      %p100 = pneg %p99
      // Predicated region
      $region9: #{tpu_custom_call.1} parent=5 // pred_check
        _
      $region10: #{tpu_custom_call.1} parent=5 // pred_check_branch
        %102 = sbr.rel (%p99) target = $region12
      $region11: #{tpu_custom_call.1} parent=5 // pred_region
        %s103 = ssub.s32 %s11, 1
      $region12: #{tpu_custom_call.1} parent=5 // pred_fallthru
        _
      %p104 = scmp.lt.s32.totalorder %s11, 2
      // Predicated region
      $region13: #{tpu_custom_call.1} parent=5 // pred_check
        %p105 = pneg %p104
      $region14: #{tpu_custom_call.1} parent=5 // pred_check_branch
        %107 = sbr.rel (%p105) target = $region16
      $region15: #{tpu_custom_call.1} parent=5 // pred_region
        // Predicated region
        $region17: #{tpu_custom_call.1} parent=15 // pred_check
          %p108 = pneg %p31
        $region18: #{tpu_custom_call.1} parent=15 // pred_check_branch
          %110 = sbr.rel (%p108) target = $region20
        $region19: #{tpu_custom_call.1} parent=15 // pred_region
          %s111 = smul.u32 2, %s11
          %p112 = scmp.lt.s32.totalorder %s111, 3
          %s113 = scalar_select %p112, %s111, 3
          %s114 = smul.addr %s113, 16
          %s115 = smul.addr %s114, 8
          %s116 = scalar_lea.vmem %s0, %s115
          %s117 = smul.u32 2, %s11
        $region20: #{tpu_custom_call.1} parent=15 // pred_fallthru
          _
        // Predicated region
        $region21: #{tpu_custom_call.1} parent=15 // pred_check
          %p118 = pneg %p57
        $region22: #{tpu_custom_call.1} parent=15 // pred_check_branch
          %120 = sbr.rel (%p118) target = $region24
        $region23: #{tpu_custom_call.1} parent=15 // pred_region
          %s121 = smul.u32 2, %s11
          %p122 = scmp.lt.s32.totalorder %s121, 3
          %s123 = scalar_select %p122, %s121, 3
          %s124 = smul.addr %s123, 2
          %s125 = scalar_lea.vmem %s1, %s124
          %s126 = smul.u32 2, %s11
        $region24: #{tpu_custom_call.1} parent=15 // pred_fallthru
          _
      $region16: #{tpu_custom_call.1} parent=5 // pred_fallthru
        _
      %p127 = scmp.le.s32.totalorder 1, %s11
      %p128 = scmp.lt.s32.totalorder %s11, 3
      %p129 = pnand %p127, %p128
      %p130 = pneg %p129
      // Predicated region
      $region25: #{tpu_custom_call.1} parent=5 // pred_check
        _
      $region26: #{tpu_custom_call.1} parent=5 // pred_check_branch
        %132 = sbr.rel (%p129) target = $region28
      $region27: #{tpu_custom_call.1} parent=5 // pred_region
        %s133 = ssub.s32 %s11, 1
        %s134 = smul.u32 2, %s16
        %p135 = scmp.lt.s32.totalorder %s134, 3
        %s136 = scalar_select %p135, %s134, 3
        %s137 = smul.addr %s136, 16
        %s138 = smul.addr %s137, 8
        %s139 = scalar_lea.vmem %s0, %s138
        %p140 = pneg %p37
        %p141 = pneg %p34
        %s142 = smul.u32 2, %s16
        %p143 = scmp.lt.s32.totalorder %s142, 3
        %s144 = scalar_select %p143, %s142, 3
        %s145 = smul.addr %s144, 2
        %s146 = scalar_lea.vmem %s1, %s145
        %p147 = pneg %p63
        %p148 = pneg %p60
        %p149 = pneg %p89
        %p150 = pneg %p86
        %s151 = sand.u32 %s76, 1
        %s152 = scalar_lea.sflag [#allocation3], %s151
        %s153 = sand.u32 %s76, 1
        %s154 = smul.addr %s153, 256
        %s155 = scalar_lea.vmem [#allocation2], %s154
        %s156 = smul.u32 2, %s16
        %p157 = scmp.lt.s32.totalorder %s156, 3
        %s158 = scalar_select %p157, %s156, 3
        %s159 = smul.addr %s158, 16
        %s160 = smul.addr %s159, 8
        %s161 = scalar_lea.vmem %s0, %s160
        %s162 = smul.u32 2, %s16
        %s163 = smul.u32 2, %s16
        %p164 = scmp.lt.s32.totalorder %s163, 3
        %s165 = scalar_select %p164, %s163, 3
        %s166 = smul.addr %s165, 2
        %s167 = scalar_lea.vmem %s1, %s166
        %s168 = smul.u32 2, %s16
        %s169 = smul.u32 2, %s16
        %v170 = vld [vmem:[%s161] sm:$0xff]
        %v171 = vld [vmem:[%s161 + $0x8] sm:$0xff]
        %v172 = vld [vmem:[%s161 + $0x10] sm:$0xff]
        %v173 = vld [vmem:[%s161 + $0x18] sm:$0xff]
        %v174 = vld [vmem:[%s161 + $0x20] sm:$0xff]
        %v175 = vld [vmem:[%s161 + $0x28] sm:$0xff]
        %v176 = vld [vmem:[%s161 + $0x30] sm:$0xff]
        %v177 = vld [vmem:[%s161 + $0x38] sm:$0xff]
        %v178 = vld [vmem:[%s161 + $0x40] sm:$0xff]
        %v179 = vld [vmem:[%s161 + $0x48] sm:$0xff]
        %v180 = vld [vmem:[%s161 + $0x50] sm:$0xff]
        %v181 = vld [vmem:[%s161 + $0x58] sm:$0xff]
        %v182 = vld [vmem:[%s161 + $0x60] sm:$0xff]
        %v183 = vld [vmem:[%s161 + $0x68] sm:$0xff]
        %v184 = vld [vmem:[%s161 + $0x70] sm:$0xff]
        %v185 = vld [vmem:[%s161 + $0x78] sm:$0xff]
        %v186 = vld [vmem:[%s167] sm:$0x1]
        %v187 = vld [vmem:[%s167 + $0x1] sm:$0x1]
        %189 = vset.pattern.permute.xlu0 0
        %190 = vperm.xlu0 %189, %v170
        %v191 = vpop.permute.xlu0 %190
        %194 = vset.pattern.permute.xlu0 0
        %195 = vperm.xlu0 %194, %v171
        %v196 = vpop.permute.xlu0 %195
        %199 = vset.pattern.permute.xlu0 0
        %200 = vperm.xlu0 %199, %v172
        %v201 = vpop.permute.xlu0 %200
        %204 = vset.pattern.permute.xlu0 0
        %205 = vperm.xlu0 %204, %v173
        %v206 = vpop.permute.xlu0 %205
        %209 = vset.pattern.permute.xlu0 0
        %210 = vperm.xlu0 %209, %v174
        %v211 = vpop.permute.xlu0 %210
        %214 = vset.pattern.permute.xlu0 0
        %215 = vperm.xlu0 %214, %v175
        %v216 = vpop.permute.xlu0 %215
        %219 = vset.pattern.permute.xlu0 0
        %220 = vperm.xlu0 %219, %v176
        %v221 = vpop.permute.xlu0 %220
        %224 = vset.pattern.permute.xlu0 0
        %225 = vperm.xlu0 %224, %v177
        %v226 = vpop.permute.xlu0 %225
        %229 = vset.pattern.permute.xlu0 0
        %230 = vperm.xlu0 %229, %v178
        %v231 = vpop.permute.xlu0 %230
        %234 = vset.pattern.permute.xlu0 0
        %235 = vperm.xlu0 %234, %v179
        %v236 = vpop.permute.xlu0 %235
        %239 = vset.pattern.permute.xlu0 0
        %240 = vperm.xlu0 %239, %v180
        %v241 = vpop.permute.xlu0 %240
        %244 = vset.pattern.permute.xlu0 0
        %245 = vperm.xlu0 %244, %v181
        %v246 = vpop.permute.xlu0 %245
        %249 = vset.pattern.permute.xlu0 0
        %250 = vperm.xlu0 %249, %v182
        %v251 = vpop.permute.xlu0 %250
        %254 = vset.pattern.permute.xlu0 0
        %255 = vperm.xlu0 %254, %v183
        %v256 = vpop.permute.xlu0 %255
        %259 = vset.pattern.permute.xlu0 0
        %260 = vperm.xlu0 %259, %v184
        %v261 = vpop.permute.xlu0 %260
        %264 = vset.pattern.permute.xlu0 0
        %265 = vperm.xlu0 %264, %v185
        %v266 = vpop.permute.xlu0 %265
        %v268 = vlaneseq
        %v269 = vshrl.u32 %v268, 7
        %v270 = vsub.s32 0, %v269
        %v271 = vrot.slane %v186, %v270
        %v272 = vsub.f32 %v191, %v271
        %v273 = vsub.f32 %v196, %v271
        %v274 = vsub.f32 %v201, %v271
        %v275 = vsub.f32 %v206, %v271
        %v276 = vsub.f32 %v211, %v271
        %v277 = vsub.f32 %v216, %v271
        %v278 = vsub.f32 %v221, %v271
        %v279 = vsub.f32 %v226, %v271
        %v280 = vsub.f32 %v231, %v271
        %v281 = vsub.f32 %v236, %v271
        %v282 = vsub.f32 %v241, %v271
        %v283 = vsub.f32 %v246, %v271
        %v284 = vsub.f32 %v251, %v271
        %v285 = vsub.f32 %v256, %v271
        %v286 = vsub.f32 %v261, %v271
        %v287 = vsub.f32 %v266, %v271
        %v288 = vand.u32 2147483647, %v272
        %v289 = vand.u32 2147483647, %v273
        %v290 = vand.u32 2147483647, %v274
        %v291 = vand.u32 2147483647, %v275
        %v292 = vand.u32 2147483647, %v276
        %v293 = vand.u32 2147483647, %v277
        %v294 = vand.u32 2147483647, %v278
        %v295 = vand.u32 2147483647, %v279
        %v296 = vand.u32 2147483647, %v280
        %v297 = vand.u32 2147483647, %v281
        %v298 = vand.u32 2147483647, %v282
        %v299 = vand.u32 2147483647, %v283
        %v300 = vand.u32 2147483647, %v284
        %v301 = vand.u32 2147483647, %v285
        %v302 = vand.u32 2147483647, %v286
        %v303 = vand.u32 2147483647, %v287
        %304 = vset.pattern.permute.xlu0 1
        %305 = vperm.xlu0 %304, %v170
        %v306 = vpop.permute.xlu0 %305
        %308 = vset.pattern.permute.xlu0 1
        %309 = vperm.xlu0 %308, %v171
        %v310 = vpop.permute.xlu0 %309
        %312 = vset.pattern.permute.xlu0 1
        %313 = vperm.xlu0 %312, %v172
        %v314 = vpop.permute.xlu0 %313
        %316 = vset.pattern.permute.xlu0 1
        %317 = vperm.xlu0 %316, %v173
        %v318 = vpop.permute.xlu0 %317
        %320 = vset.pattern.permute.xlu0 1
        %321 = vperm.xlu0 %320, %v174
        %v322 = vpop.permute.xlu0 %321
        %324 = vset.pattern.permute.xlu0 1
        %325 = vperm.xlu0 %324, %v175
        %v326 = vpop.permute.xlu0 %325
        %328 = vset.pattern.permute.xlu0 1
        %329 = vperm.xlu0 %328, %v176
        %v330 = vpop.permute.xlu0 %329
        %332 = vset.pattern.permute.xlu0 1
        %333 = vperm.xlu0 %332, %v177
        %v334 = vpop.permute.xlu0 %333
        %336 = vset.pattern.permute.xlu0 1
        %337 = vperm.xlu0 %336, %v178
        %v338 = vpop.permute.xlu0 %337
        %340 = vset.pattern.permute.xlu0 1
        %341 = vperm.xlu0 %340, %v179
        %v342 = vpop.permute.xlu0 %341
        %344 = vset.pattern.permute.xlu0 1
        %345 = vperm.xlu0 %344, %v180
        %v346 = vpop.permute.xlu0 %345
        %348 = vset.pattern.permute.xlu0 1
        %349 = vperm.xlu0 %348, %v181
        %v350 = vpop.permute.xlu0 %349
        %352 = vset.pattern.permute.xlu0 1
        %353 = vperm.xlu0 %352, %v182
        %v354 = vpop.permute.xlu0 %353
        %356 = vset.pattern.permute.xlu0 1
        %357 = vperm.xlu0 %356, %v183
        %v358 = vpop.permute.xlu0 %357
        %360 = vset.pattern.permute.xlu0 1
        %361 = vperm.xlu0 %360, %v184
        %v362 = vpop.permute.xlu0 %361
        %364 = vset.pattern.permute.xlu0 1
        %365 = vperm.xlu0 %364, %v185
        %v366 = vpop.permute.xlu0 %365
        %v368 = vlaneseq
        %v369 = vshrl.u32 %v368, 7
        %v370 = vsub.s32 0, %v369
        %v371 = vrot.slane %v187, %v370
        %v372 = vsub.f32 %v306, %v371
        %v373 = vsub.f32 %v310, %v371
        %v374 = vsub.f32 %v314, %v371
        %v375 = vsub.f32 %v318, %v371
        %v376 = vsub.f32 %v322, %v371
        %v377 = vsub.f32 %v326, %v371
        %v378 = vsub.f32 %v330, %v371
        %v379 = vsub.f32 %v334, %v371
        %v380 = vsub.f32 %v338, %v371
        %v381 = vsub.f32 %v342, %v371
        %v382 = vsub.f32 %v346, %v371
        %v383 = vsub.f32 %v350, %v371
        %v384 = vsub.f32 %v354, %v371
        %v385 = vsub.f32 %v358, %v371
        %v386 = vsub.f32 %v362, %v371
        %v387 = vsub.f32 %v366, %v371
        %v388 = vand.u32 2147483647, %v372
        %v389 = vand.u32 2147483647, %v373
        %v390 = vand.u32 2147483647, %v374
        %v391 = vand.u32 2147483647, %v375
        %v392 = vand.u32 2147483647, %v376
        %v393 = vand.u32 2147483647, %v377
        %v394 = vand.u32 2147483647, %v378
        %v395 = vand.u32 2147483647, %v379
        %v396 = vand.u32 2147483647, %v380
        %v397 = vand.u32 2147483647, %v381
        %v398 = vand.u32 2147483647, %v382
        %v399 = vand.u32 2147483647, %v383
        %v400 = vand.u32 2147483647, %v384
        %v401 = vand.u32 2147483647, %v385
        %v402 = vand.u32 2147483647, %v386
        %v403 = vand.u32 2147483647, %v387
        %v404 = vmax.f32 %v288, %v388
        %v405 = vmax.f32 %v289, %v389
        %v406 = vmax.f32 %v290, %v390
        %v407 = vmax.f32 %v291, %v391
        %v408 = vmax.f32 %v292, %v392
        %v409 = vmax.f32 %v293, %v393
        %v410 = vmax.f32 %v294, %v394
        %v411 = vmax.f32 %v295, %v395
        %v412 = vmax.f32 %v296, %v396
        %v413 = vmax.f32 %v297, %v397
        %v414 = vmax.f32 %v298, %v398
        %v415 = vmax.f32 %v299, %v399
        %v416 = vmax.f32 %v300, %v400
        %v417 = vmax.f32 %v301, %v401
        %v418 = vmax.f32 %v302, %v402
        %v419 = vmax.f32 %v303, %v403
        %420 = vst [vmem:[%s155] sm:$0xff] %v404
        %421 = vst [vmem:[%s155 + $0x8] sm:$0xff] %v405
        %422 = vst [vmem:[%s155 + $0x10] sm:$0xff] %v406
        %423 = vst [vmem:[%s155 + $0x18] sm:$0xff] %v407
        %424 = vst [vmem:[%s155 + $0x20] sm:$0xff] %v408
        %425 = vst [vmem:[%s155 + $0x28] sm:$0xff] %v409
        %426 = vst [vmem:[%s155 + $0x30] sm:$0xff] %v410
        %427 = vst [vmem:[%s155 + $0x38] sm:$0xff] %v411
        %428 = vst [vmem:[%s155 + $0x40] sm:$0xff] %v412
        %429 = vst [vmem:[%s155 + $0x48] sm:$0xff] %v413
        %430 = vst [vmem:[%s155 + $0x50] sm:$0xff] %v414
        %431 = vst [vmem:[%s155 + $0x58] sm:$0xff] %v415
        %432 = vst [vmem:[%s155 + $0x60] sm:$0xff] %v416
        %433 = vst [vmem:[%s155 + $0x68] sm:$0xff] %v417
        %434 = vst [vmem:[%s155 + $0x70] sm:$0xff] %v418
        %435 = vst [vmem:[%s155 + $0x78] sm:$0xff] %v419
        %s436 = scalar_lea.vmem %s161, 128
        %v437 = vld [vmem:[%s436] sm:$0xff]
        %v438 = vld [vmem:[%s436 + $0x8] sm:$0xff]
        %v439 = vld [vmem:[%s436 + $0x10] sm:$0xff]
        %v440 = vld [vmem:[%s436 + $0x18] sm:$0xff]
        %v441 = vld [vmem:[%s436 + $0x20] sm:$0xff]
        %v442 = vld [vmem:[%s436 + $0x28] sm:$0xff]
        %v443 = vld [vmem:[%s436 + $0x30] sm:$0xff]
        %v444 = vld [vmem:[%s436 + $0x38] sm:$0xff]
        %v445 = vld [vmem:[%s436 + $0x40] sm:$0xff]
        %v446 = vld [vmem:[%s436 + $0x48] sm:$0xff]
        %v447 = vld [vmem:[%s436 + $0x50] sm:$0xff]
        %v448 = vld [vmem:[%s436 + $0x58] sm:$0xff]
        %v449 = vld [vmem:[%s436 + $0x60] sm:$0xff]
        %v450 = vld [vmem:[%s436 + $0x68] sm:$0xff]
        %v451 = vld [vmem:[%s436 + $0x70] sm:$0xff]
        %v452 = vld [vmem:[%s436 + $0x78] sm:$0xff]
        %s453 = scalar_lea.vmem %s167, 2
        %v454 = vld [vmem:[%s453] sm:$0x1]
        %v455 = vld [vmem:[%s453 + $0x1] sm:$0x1]
        %457 = vset.pattern.permute.xlu0 0
        %458 = vperm.xlu0 %457, %v437
        %v459 = vpop.permute.xlu0 %458
        %462 = vset.pattern.permute.xlu0 0
        %463 = vperm.xlu0 %462, %v438
        %v464 = vpop.permute.xlu0 %463
        %467 = vset.pattern.permute.xlu0 0
        %468 = vperm.xlu0 %467, %v439
        %v469 = vpop.permute.xlu0 %468
        %472 = vset.pattern.permute.xlu0 0
        %473 = vperm.xlu0 %472, %v440
        %v474 = vpop.permute.xlu0 %473
        %477 = vset.pattern.permute.xlu0 0
        %478 = vperm.xlu0 %477, %v441
        %v479 = vpop.permute.xlu0 %478
        %482 = vset.pattern.permute.xlu0 0
        %483 = vperm.xlu0 %482, %v442
        %v484 = vpop.permute.xlu0 %483
        %487 = vset.pattern.permute.xlu0 0
        %488 = vperm.xlu0 %487, %v443
        %v489 = vpop.permute.xlu0 %488
        %492 = vset.pattern.permute.xlu0 0
        %493 = vperm.xlu0 %492, %v444
        %v494 = vpop.permute.xlu0 %493
        %497 = vset.pattern.permute.xlu0 0
        %498 = vperm.xlu0 %497, %v445
        %v499 = vpop.permute.xlu0 %498
        %502 = vset.pattern.permute.xlu0 0
        %503 = vperm.xlu0 %502, %v446
        %v504 = vpop.permute.xlu0 %503
        %507 = vset.pattern.permute.xlu0 0
        %508 = vperm.xlu0 %507, %v447
        %v509 = vpop.permute.xlu0 %508
        %512 = vset.pattern.permute.xlu0 0
        %513 = vperm.xlu0 %512, %v448
        %v514 = vpop.permute.xlu0 %513
        %517 = vset.pattern.permute.xlu0 0
        %518 = vperm.xlu0 %517, %v449
        %v519 = vpop.permute.xlu0 %518
        %522 = vset.pattern.permute.xlu0 0
        %523 = vperm.xlu0 %522, %v450
        %v524 = vpop.permute.xlu0 %523
        %527 = vset.pattern.permute.xlu0 0
        %528 = vperm.xlu0 %527, %v451
        %v529 = vpop.permute.xlu0 %528
        %532 = vset.pattern.permute.xlu0 0
        %533 = vperm.xlu0 %532, %v452
        %v534 = vpop.permute.xlu0 %533
        %v536 = vlaneseq
        %v537 = vshrl.u32 %v536, 7
        %v538 = vsub.s32 0, %v537
        %v539 = vrot.slane %v454, %v538
        %v540 = vsub.f32 %v459, %v539
        %v541 = vsub.f32 %v464, %v539
        %v542 = vsub.f32 %v469, %v539
        %v543 = vsub.f32 %v474, %v539
        %v544 = vsub.f32 %v479, %v539
        %v545 = vsub.f32 %v484, %v539
        %v546 = vsub.f32 %v489, %v539
        %v547 = vsub.f32 %v494, %v539
        %v548 = vsub.f32 %v499, %v539
        %v549 = vsub.f32 %v504, %v539
        %v550 = vsub.f32 %v509, %v539
        %v551 = vsub.f32 %v514, %v539
        %v552 = vsub.f32 %v519, %v539
        %v553 = vsub.f32 %v524, %v539
        %v554 = vsub.f32 %v529, %v539
        %v555 = vsub.f32 %v534, %v539
        %v556 = vand.u32 2147483647, %v540
        %v557 = vand.u32 2147483647, %v541
        %v558 = vand.u32 2147483647, %v542
        %v559 = vand.u32 2147483647, %v543
        %v560 = vand.u32 2147483647, %v544
        %v561 = vand.u32 2147483647, %v545
        %v562 = vand.u32 2147483647, %v546
        %v563 = vand.u32 2147483647, %v547
        %v564 = vand.u32 2147483647, %v548
        %v565 = vand.u32 2147483647, %v549
        %v566 = vand.u32 2147483647, %v550
        %v567 = vand.u32 2147483647, %v551
        %v568 = vand.u32 2147483647, %v552
        %v569 = vand.u32 2147483647, %v553
        %v570 = vand.u32 2147483647, %v554
        %v571 = vand.u32 2147483647, %v555
        %572 = vset.pattern.permute.xlu0 1
        %573 = vperm.xlu0 %572, %v437
        %v574 = vpop.permute.xlu0 %573
        %576 = vset.pattern.permute.xlu0 1
        %577 = vperm.xlu0 %576, %v438
        %v578 = vpop.permute.xlu0 %577
        %580 = vset.pattern.permute.xlu0 1
        %581 = vperm.xlu0 %580, %v439
        %v582 = vpop.permute.xlu0 %581
        %584 = vset.pattern.permute.xlu0 1
        %585 = vperm.xlu0 %584, %v440
        %v586 = vpop.permute.xlu0 %585
        %588 = vset.pattern.permute.xlu0 1
        %589 = vperm.xlu0 %588, %v441
        %v590 = vpop.permute.xlu0 %589
        %592 = vset.pattern.permute.xlu0 1
        %593 = vperm.xlu0 %592, %v442
        %v594 = vpop.permute.xlu0 %593
        %596 = vset.pattern.permute.xlu0 1
        %597 = vperm.xlu0 %596, %v443
        %v598 = vpop.permute.xlu0 %597
        %600 = vset.pattern.permute.xlu0 1
        %601 = vperm.xlu0 %600, %v444
        %v602 = vpop.permute.xlu0 %601
        %604 = vset.pattern.permute.xlu0 1
        %605 = vperm.xlu0 %604, %v445
        %v606 = vpop.permute.xlu0 %605
        %608 = vset.pattern.permute.xlu0 1
        %609 = vperm.xlu0 %608, %v446
        %v610 = vpop.permute.xlu0 %609
        %612 = vset.pattern.permute.xlu0 1
        %613 = vperm.xlu0 %612, %v447
        %v614 = vpop.permute.xlu0 %613
        %616 = vset.pattern.permute.xlu0 1
        %617 = vperm.xlu0 %616, %v448
        %v618 = vpop.permute.xlu0 %617
        %620 = vset.pattern.permute.xlu0 1
        %621 = vperm.xlu0 %620, %v449
        %v622 = vpop.permute.xlu0 %621
        %624 = vset.pattern.permute.xlu0 1
        %625 = vperm.xlu0 %624, %v450
        %v626 = vpop.permute.xlu0 %625
        %628 = vset.pattern.permute.xlu0 1
        %629 = vperm.xlu0 %628, %v451
        %v630 = vpop.permute.xlu0 %629
        %632 = vset.pattern.permute.xlu0 1
        %633 = vperm.xlu0 %632, %v452
        %v634 = vpop.permute.xlu0 %633
        %v636 = vlaneseq
        %v637 = vshrl.u32 %v636, 7
        %v638 = vsub.s32 0, %v637
        %v639 = vrot.slane %v455, %v638
        %v640 = vsub.f32 %v574, %v639
        %v641 = vsub.f32 %v578, %v639
        %v642 = vsub.f32 %v582, %v639
        %v643 = vsub.f32 %v586, %v639
        %v644 = vsub.f32 %v590, %v639
        %v645 = vsub.f32 %v594, %v639
        %v646 = vsub.f32 %v598, %v639
        %v647 = vsub.f32 %v602, %v639
        %v648 = vsub.f32 %v606, %v639
        %v649 = vsub.f32 %v610, %v639
        %v650 = vsub.f32 %v614, %v639
        %v651 = vsub.f32 %v618, %v639
        %v652 = vsub.f32 %v622, %v639
        %v653 = vsub.f32 %v626, %v639
        %v654 = vsub.f32 %v630, %v639
        %v655 = vsub.f32 %v634, %v639
        %v656 = vand.u32 2147483647, %v640
        %v657 = vand.u32 2147483647, %v641
        %v658 = vand.u32 2147483647, %v642
        %v659 = vand.u32 2147483647, %v643
        %v660 = vand.u32 2147483647, %v644
        %v661 = vand.u32 2147483647, %v645
        %v662 = vand.u32 2147483647, %v646
        %v663 = vand.u32 2147483647, %v647
        %v664 = vand.u32 2147483647, %v648
        %v665 = vand.u32 2147483647, %v649
        %v666 = vand.u32 2147483647, %v650
        %v667 = vand.u32 2147483647, %v651
        %v668 = vand.u32 2147483647, %v652
        %v669 = vand.u32 2147483647, %v653
        %v670 = vand.u32 2147483647, %v654
        %v671 = vand.u32 2147483647, %v655
        %v672 = vmax.f32 %v556, %v656
        %v673 = vmax.f32 %v557, %v657
        %v674 = vmax.f32 %v558, %v658
        %v675 = vmax.f32 %v559, %v659
        %v676 = vmax.f32 %v560, %v660
        %v677 = vmax.f32 %v561, %v661
        %v678 = vmax.f32 %v562, %v662
        %v679 = vmax.f32 %v563, %v663
        %v680 = vmax.f32 %v564, %v664
        %v681 = vmax.f32 %v565, %v665
        %v682 = vmax.f32 %v566, %v666
        %v683 = vmax.f32 %v567, %v667
        %v684 = vmax.f32 %v568, %v668
        %v685 = vmax.f32 %v569, %v669
        %v686 = vmax.f32 %v570, %v670
        %v687 = vmax.f32 %v571, %v671
        %s688 = scalar_lea.vmem %s155, 128 [#allocation2]
        %689 = vst [vmem:[%s688] sm:$0xff] %v672
        %690 = vst [vmem:[%s688 + $0x8] sm:$0xff] %v673
        %691 = vst [vmem:[%s688 + $0x10] sm:$0xff] %v674
        %692 = vst [vmem:[%s688 + $0x18] sm:$0xff] %v675
        %693 = vst [vmem:[%s688 + $0x20] sm:$0xff] %v676
        %694 = vst [vmem:[%s688 + $0x28] sm:$0xff] %v677
        %695 = vst [vmem:[%s688 + $0x30] sm:$0xff] %v678
        %696 = vst [vmem:[%s688 + $0x38] sm:$0xff] %v679
        %697 = vst [vmem:[%s688 + $0x40] sm:$0xff] %v680
        %698 = vst [vmem:[%s688 + $0x48] sm:$0xff] %v681
        %699 = vst [vmem:[%s688 + $0x50] sm:$0xff] %v682
        %700 = vst [vmem:[%s688 + $0x58] sm:$0xff] %v683
        %701 = vst [vmem:[%s688 + $0x60] sm:$0xff] %v684
        %702 = vst [vmem:[%s688 + $0x68] sm:$0xff] %v685
        %703 = vst [vmem:[%s688 + $0x70] sm:$0xff] %v686
        %704 = vst [vmem:[%s688 + $0x78] sm:$0xff] %v687
        %s705 = sand.u32 %s76, 1
        %s706 = scalar_lea.sflag [#allocation3], %s705
        %s707 = sand.u32 %s76, 1
        %s708 = smul.addr %s707, 256
        %s709 = scalar_lea.vmem [#allocation2], %s708
        // Predicated region
        $region29: #{tpu_custom_call.1} parent=27 // pred_check
          %p710 = pneg %p86
        $region30: #{tpu_custom_call.1} parent=27 // pred_check_branch
          %712 = sbr.rel (%p710) target = $region32
        $region31: #{tpu_custom_call.1} parent=27 // pred_region
          %s713 = smul.u32 2, %s16
          %s715 = ssub.s32 4096, 4096
          %716 = vsyncadd %s706, %s715
          %s717 = smul.addr %s713, 16
          %s718 = smul.addr %s717, 128
          %s719 = scalar_lea.hbm %s2, %s718
          %s720 = sshll.u32 %s709, 4
          %s721 = int_to_ptr.vmem [resolvable:$true] %s720
          %726 = dma.vmem_to_hbm [thread:$0]  %s721, 4096, %s719, %s706, 128, 128, 8
        $region32: #{tpu_custom_call.1} parent=27 // pred_fallthru
          _
      $region28: #{tpu_custom_call.1} parent=5 // pred_fallthru
        _
      %p727 = scmp.le.s32.totalorder 2, %s11
      // Predicated region
      $region33: #{tpu_custom_call.1} parent=5 // pred_check
        %p728 = pneg %p727
      $region34: #{tpu_custom_call.1} parent=5 // pred_check_branch
        %730 = sbr.rel (%p728) target = $region36
      $region35: #{tpu_custom_call.1} parent=5 // pred_region
        %s731 = ssub.s32 %s11, 2
        // Predicated region
        $region37: #{tpu_custom_call.1} parent=35 // pred_check
          %p732 = pneg %p92
        $region38: #{tpu_custom_call.1} parent=35 // pred_check_branch
          %734 = sbr.rel (%p732) target = $region40
        $region39: #{tpu_custom_call.1} parent=35 // pred_region
          %s735 = sand.u32 %s77, 1
          %s736 = scalar_lea.sflag [#allocation3], %s735
          %s737 = sand.u32 %s77, 1
          %s738 = smul.addr %s737, 256
          %s739 = scalar_lea.vmem [#allocation2], %s738
          %740 = dma.done %s736, 4096
        $region40: #{tpu_custom_call.1} parent=35 // pred_fallthru
          _
      $region36: #{tpu_custom_call.1} parent=5 // pred_fallthru
        _
    $region6: #{tpu_custom_call.1} parent=1 // loop_footer
      %s15 = sadd.s32 1, %s11
    $region7: #{tpu_custom_call.1} parent=1 // loop_footer_branch
      %10 = sbr.rel target = $region3
    $region8: #{tpu_custom_call.1} parent=1 // loop_exit
      _
    %741 = vsyncpa [#allocation3], 1
    %s742 = scalar_lea.sflag [#allocation3], 1
    %743 = vsyncpa %s742, 1

</llo_original>
